<compile_context>
chip_gen: v5e
topology: v5e:2x2
jax: 0.10.0
libtpu: 0.0.40
codegen_flags: <defaults>
</compile_context>

<pallas_src>
import functools

import jax
import jax.numpy as jnp
from jax import lax
from jax.experimental import pallas as pl
from jax.experimental.pallas import tpu as pltpu


_LANES = 128
_MAX_TB = 32
# 2 inputs x 2 pipeline buffers x 4B x (TB*TT) elems <= 16 MiB  =>  TB*TT <= 2^20
_TILE_ELEMS_BUDGET = 1 << 20


def _cdiv(a, b):
    return (a + b - 1) // b


def _round_up(x, m):
    return ((x + m - 1) // m) * m


def _snr_partial_kernel(den_ref, cln_ref, sig_out_ref, err_out_ref,
                        sig_acc, err_acc, *, t_total, tt, nt_inner, mask_time):
    """Accumulate per-row signal/error power over the innermost time axis."""
    c = pl.program_id(1)          # "parallel" time-chunk index
    t = pl.program_id(2)          # "arbitrary" reduction (time-tile) index
    nt = pl.num_programs(2)

    @pl.when(t == 0)
    def _init():
        sig_acc[...] = jnp.zeros_like(sig_acc)
        err_acc[...] = jnp.zeros_like(err_acc)

    clean = cln_ref[...].astype(jnp.float32)   # no-op for f32, upcast for bf16
    den = den_ref[...].astype(jnp.float32)

    if mask_time:
        # Tail tiles (T not a multiple of TT) and phantom tiles of the last
        # chunk contain garbage past sample T: zero them before squaring.
        t_start = (c * nt_inner + t) * tt
        col = lax.broadcasted_iota(jnp.int32, clean.shape, 1)
        valid = (col + t_start) < t_total
        clean = jnp.where(valid, clean, 0.0)
        den = jnp.where(valid, den, 0.0)

    diff = den - clean
    # VPU multiplies + adds, one cross-lane reduce per (8,128) row group;
    # fully hidden behind the HBM stream (kernel is DMA-bound).
    sig_acc[...] += jnp.sum(clean * clean, axis=-1, keepdims=True)
    err_acc[...] += jnp.sum(diff * diff, axis=-1, keepdims=True)

    @pl.when(t == nt - 1)
    def _finalize():
        # Lane-dense (TB, 128) unmasked stores, written once per (b, c) block.
        sig_out_ref[...] = jnp.broadcast_to(sig_acc[...], sig_out_ref.shape)
        err_out_ref[...] = jnp.broadcast_to(err_acc[...], err_out_ref.shape)


def _snr_power_sums(denoised, clean, *, tt_max_override=None):
    """Per-waveform (signal_power, error_power) sums. Returns two (B,) arrays."""
    assert denoised.shape == clean.shape and denoised.ndim == 2
    B, T = denoised.shape

    # Sublane granularity of the narrower input dtype (f32: 8, bf16: 16, i8: 32).
    min_itemsize = min(denoised.dtype.itemsize, clean.dtype.itemsize)
    sub = max(8, 32 // min_itemsize)
    TB = max(sub, min(_MAX_TB, _round_up(B, sub)))

    # Time tile: as large as the VMEM budget allows (multiple of 128 lanes).
    tt_max = (_TILE_ELEMS_BUDGET // TB) // _LANES * _LANES
    if tt_max_override is not None:           # test hook; must be multiple of 128
        tt_max = tt_max_override
    TT = min(_round_up(T, _LANES), tt_max)

    nb = _cdiv(B, TB)
    t_tiles = _cdiv(T, TT)
    # Small batch (single batch block): split time into 2 "parallel" chunks so
    # both v7x TensorCores get work. No effect on single-TC v5e/v6e.
    nc = 2 if (nb == 1 and t_tiles >= 2) else 1
    nt = _cdiv(t_tiles, nc)

    mask_time = (T % TT != 0) or (nc * nt != t_tiles)

    if nc * nt == t_tiles:
        in_index = lambda b, c, t: (b, c * nt + t)
    else:
        # Phantom tiles of the last chunk re-read the last valid tile; the
        # in-kernel mask zeroes their contribution (logical offset >= T).
        in_index = lambda b, c, t: (b, jnp.minimum(c * nt + t, t_tiles - 1))
    out_index = lambda b, c, t: (b, c)

    kernel = functools.partial(_snr_partial_kernel, t_total=T, tt=TT,
                               nt_inner=nt, mask_time=mask_time)

    out_rows = nb * TB
    out_sds = jax.ShapeDtypeStruct((out_rows, nc * _LANES), jnp.float32)

    sig_out, err_out = pl.pallas_call(
        kernel,
        out_shape=(out_sds, out_sds),
        grid_spec=pltpu.PrefetchScalarGridSpec(
            num_scalar_prefetch=0,
            grid=(nb, nc, nt),
            in_specs=[
                pl.BlockSpec((TB, TT), in_index),
                pl.BlockSpec((TB, TT), in_index),
            ],
            out_specs=[
                pl.BlockSpec((TB, _LANES), out_index),
                pl.BlockSpec((TB, _LANES), out_index),
            ],
            scratch_shapes=[
                pltpu.VMEM((TB, 1), jnp.float32),  # per-row signal power
                pltpu.VMEM((TB, 1), jnp.float32),  # per-row error power
            ],
        ),
        compiler_params=pltpu.CompilerParams(
            # batch blocks and time chunks are independent (megacore-parallel);
            # the time-tile axis is the reduction -> innermost and arbitrary.
            dimension_semantics=("parallel", "parallel", "arbitrary"),
            # explicit budget: <=16 MiB of DMA buffers + tiny outputs/scratch,
            # safe on v5e (16 MiB default scoped) through v7x (64 MiB physical).
            vmem_limit_bytes=32 * 1024 * 1024,
        ),
    )(denoised, clean)

    # Lane 0 of each chunk block holds that chunk's partial sum; combine the
    # chunks and drop padded batch rows in plain JAX (negligible work).
    sig = sig_out.reshape(out_rows, nc, _LANES)[:B, :, 0].sum(axis=1)
    err = err_out.reshape(out_rows, nc, _LANES)[:B, :, 0].sum(axis=1)
    return sig, err


def snr_per_waveform_pallas(denoised, clean, *, tt_max_override=None):
    """Per-waveform SNR(denoised vs clean) in dB; returns shape (B,)."""
    sig, err = _snr_power_sums(denoised, clean, tt_max_override=tt_max_override)
    # torchmetrics SignalNoiseRatio (zero_mean=False). err == 0 gives +inf,
    # matching the torchmetrics reference behaviour.
    return 10.0 * (jnp.log10(sig) - jnp.log10(err))


def metrics_forward(denoised, clean):
    """Pallas equivalent of Metrics.forward.

    Returns {'snr', 'pesq', 'stoi'} with metrics summed over the batch.
    """
    snr_scores = jnp.sum(snr_per_waveform_pallas(denoised, clean))
    # TODO(synk): PESQ (ITU-T P.862) and STOI are external perceptual DSP
    # pipelines (resampling, auditory filterbanks, psychoacoustic models)
    # with no clean Pallas equivalent; returned as 0.0.
    pesq_scores = 0.0
    stoi_scores = 0.0
    return {"snr": snr_scores, "pesq": pesq_scores, "stoi": stoi_scores}


if __name__ == "__main__":
    key = jax.random.PRNGKey(0)

    def _ref_snr_sum(den, cln):
        cln32 = cln.astype(jnp.float32)
        den32 = den.astype(jnp.float32)
        sig = jnp.sum(cln32 * cln32, axis=-1)
        err = jnp.sum((den32 - cln32) ** 2, axis=-1)
        return jnp.sum(10.0 * jnp.log10(sig / err))

    # 1) Small aligned batch (matches the module's per-waveform loop).
    k1, k2 = jax.random.split(key)
    B, T = 2, 2048
    clean = jax.random.normal(k1, (B, T), dtype=jnp.float32)
    denoised = clean + 0.1 * jax.random.normal(k2, (B, T), dtype=jnp.float32)
    result = metrics_forward(denoised, clean)
    snr_val = jax.block_until_ready(result["snr"])
    ref = _ref_snr_sum(denoised, clean)
    assert jnp.allclose(snr_val, ref, rtol=1e-5, atol=1e-4), (snr_val, ref)

    # 2) Unaligned T + parallel time-chunk split + tail mask (tiny tile forced).
    k3, k4 = jax.random.split(k2)
    B2, T2 = 3, 1000
    clean2 = jax.random.normal(k3, (B2, T2), dtype=jnp.float32)
    denoised2 = clean2 + 0.2 * jax.random.normal(k4, (B2, T2), dtype=jnp.float32)
    snr2 = jax.block_until_ready(
        jnp.sum(snr_per_waveform_pallas(denoised2, clean2, tt_max_override=256)))
    ref2 = _ref_snr_sum(denoised2, clean2)
    assert jnp.allclose(snr2, ref2, rtol=1e-5, atol=1e-4), (snr2, ref2)

    # 3) Odd number of time tiles -> exercises the clamped index_map path.
    k5, k6 = jax.random.split(k4)
    B3, T3 = 3, 1200
    clean3 = jax.random.normal(k5, (B3, T3), dtype=jnp.float32)
    denoised3 = clean3 + 0.3 * jax.random.normal(k6, (B3, T3), dtype=jnp.float32)
    snr3 = jax.block_until_ready(
        jnp.sum(snr_per_waveform_pallas(denoised3, clean3, tt_max_override=256)))
    ref3 = _ref_snr_sum(denoised3, clean3)
    assert jnp.allclose(snr3, ref3, rtol=1e-5, atol=1e-4), (snr3, ref3)

    print("KERNEL_OK")
</pallas_src>

<mosaic_0001>
module attributes {stable_mosaic.version = 11 : i64} {
  func.func @_snr_partial_kernel(%arg0: i32, %arg1: i32, %arg2: i32, %arg3: memref<8x2048xf32, #tpu.memory_space<vmem>>, %arg4: memref<8x2048xf32, #tpu.memory_space<vmem>>, %arg5: memref<8x128xf32, #tpu.memory_space<vmem>>, %arg6: memref<8x128xf32, #tpu.memory_space<vmem>>, %arg7: memref<8x1xf32, #tpu.memory_space<vmem>>, %arg8: memref<8x1xf32, #tpu.memory_space<vmem>>) attributes {dimension_semantics = [#tpu.dimension_semantics<parallel>, #tpu.dimension_semantics<parallel>, #tpu.dimension_semantics<arbitrary>], iteration_bounds = array<i64: 1, 1, 1>, scalar_prefetch = 0 : i64, scratch_operands = 2 : i64, tpu.core_type = #tpu.core_type<tc>, window_params = [{transform_indices = @transform_0, window_bounds = array<i64: 8, 2048>}, {transform_indices = @transform_1, window_bounds = array<i64: 8, 2048>}, {transform_indices = @transform_2, window_bounds = array<i64: 8, 128>}, {transform_indices = @transform_3, window_bounds = array<i64: 8, 128>}]} {
    %c0_i32 = arith.constant 0 : i32
    %0 = arith.cmpi eq, %arg2, %c0_i32 : i32
    %1 = arith.extui %0 : i1 to i32
    %c0_i32_0 = arith.constant 0 : i32
    %2 = arith.cmpi ne, %1, %c0_i32_0 : i32
    scf.if %2 {
      %cst_15 = arith.constant 0.000000e+00 : f32
      %21 = vector.broadcast %cst_15 : f32 to vector<8x1xf32>
      %c0_16 = arith.constant 0 : index
      %c0_17 = arith.constant 0 : index
      %22 = vector.load %arg7[%c0_16, %c0_17] : memref<8x1xf32, #tpu.memory_space<vmem>>, vector<8x1xf32>
      tpu.vector_store %arg7[%c0_16, %c0_17], %21 {strides = array<i32>} : memref<8x1xf32, #tpu.memory_space<vmem>>, vector<8x1xf32>,
      %cst_18 = arith.constant 0.000000e+00 : f32
      %23 = vector.broadcast %cst_18 : f32 to vector<8x1xf32>
      %c0_19 = arith.constant 0 : index
      %c0_20 = arith.constant 0 : index
      %24 = vector.load %arg8[%c0_19, %c0_20] : memref<8x1xf32, #tpu.memory_space<vmem>>, vector<8x1xf32>
      tpu.vector_store %arg8[%c0_19, %c0_20], %23 {strides = array<i32>} : memref<8x1xf32, #tpu.memory_space<vmem>>, vector<8x1xf32>,
    } else {
    }
    %c0 = arith.constant 0 : index
    %c0_1 = arith.constant 0 : index
    %3 = vector.load %arg4[%c0, %c0_1] : memref<8x2048xf32, #tpu.memory_space<vmem>>, vector<8x2048xf32>
    %c0_2 = arith.constant 0 : index
    %c0_3 = arith.constant 0 : index
    %4 = vector.load %arg3[%c0_2, %c0_3] : memref<8x2048xf32, #tpu.memory_space<vmem>>, vector<8x2048xf32>
    %5 = arith.subf %4, %3 : vector<8x2048xf32>
    %c0_4 = arith.constant 0 : index
    %c0_5 = arith.constant 0 : index
    %6 = vector.load %arg7[%c0_4, %c0_5] : memref<8x1xf32, #tpu.memory_space<vmem>>, vector<8x1xf32>
    %7 = arith.mulf %3, %3 : vector<8x2048xf32>
    %cst = arith.constant dense<0.000000e+00> : vector<8xf32>
    %8 = vector.multi_reduction <add>, %7, %cst [1] : vector<8x2048xf32> to vector<8xf32>
    %9 = vector.shape_cast %8 : vector<8xf32> to vector<8x1xf32>
    %10 = arith.addf %6, %9 : vector<8x1xf32>
    %c0_6 = arith.constant 0 : index
    %c0_7 = arith.constant 0 : index
    %11 = vector.load %arg7[%c0_6, %c0_7] : memref<8x1xf32, #tpu.memory_space<vmem>>, vector<8x1xf32>
    tpu.vector_store %arg7[%c0_6, %c0_7], %10 {strides = array<i32>} : memref<8x1xf32, #tpu.memory_space<vmem>>, vector<8x1xf32>,
    %c0_8 = arith.constant 0 : index
    %c0_9 = arith.constant 0 : index
    %12 = vector.load %arg8[%c0_8, %c0_9] : memref<8x1xf32, #tpu.memory_space<vmem>>, vector<8x1xf32>
    %13 = arith.mulf %5, %5 : vector<8x2048xf32>
    %cst_10 = arith.constant dense<0.000000e+00> : vector<8xf32>
    %14 = vector.multi_reduction <add>, %13, %cst_10 [1] : vector<8x2048xf32> to vector<8xf32>
    %15 = vector.shape_cast %14 : vector<8xf32> to vector<8x1xf32>
    %16 = arith.addf %12, %15 : vector<8x1xf32>
    %c0_11 = arith.constant 0 : index
    %c0_12 = arith.constant 0 : index
    %17 = vector.load %arg8[%c0_11, %c0_12] : memref<8x1xf32, #tpu.memory_space<vmem>>, vector<8x1xf32>
    tpu.vector_store %arg8[%c0_11, %c0_12], %16 {strides = array<i32>} : memref<8x1xf32, #tpu.memory_space<vmem>>, vector<8x1xf32>,
    %c0_i32_13 = arith.constant 0 : i32
    %18 = arith.cmpi eq, %arg2, %c0_i32_13 : i32
    %19 = arith.extui %18 : i1 to i32
    %c0_i32_14 = arith.constant 0 : i32
    %20 = arith.cmpi ne, %19, %c0_i32_14 : i32
    scf.if %20 {
      %c0_15 = arith.constant 0 : index
      %c0_16 = arith.constant 0 : index
      %21 = vector.load %arg7[%c0_15, %c0_16] : memref<8x1xf32, #tpu.memory_space<vmem>>, vector<8x1xf32>
      %22 = vector.shape_cast %21 : vector<8x1xf32> to vector<8x1xf32>
      %23 = vector.broadcast %22 : vector<8x1xf32> to vector<8x128xf32>
      %c0_17 = arith.constant 0 : index
      %c0_18 = arith.constant 0 : index
      %24 = vector.load %arg5[%c0_17, %c0_18] : memref<8x128xf32, #tpu.memory_space<vmem>>, vector<8x128xf32>
      tpu.vector_store %arg5[%c0_17, %c0_18], %23 {strides = array<i32>} : memref<8x128xf32, #tpu.memory_space<vmem>>, vector<8x128xf32>,
      %c0_19 = arith.constant 0 : index
      %c0_20 = arith.constant 0 : index
      %25 = vector.load %arg8[%c0_19, %c0_20] : memref<8x1xf32, #tpu.memory_space<vmem>>, vector<8x1xf32>
      %26 = vector.shape_cast %25 : vector<8x1xf32> to vector<8x1xf32>
      %27 = vector.broadcast %26 : vector<8x1xf32> to vector<8x128xf32>
      %c0_21 = arith.constant 0 : index
      %c0_22 = arith.constant 0 : index
      %28 = vector.load %arg6[%c0_21, %c0_22] : memref<8x128xf32, #tpu.memory_space<vmem>>, vector<8x128xf32>
      tpu.vector_store %arg6[%c0_21, %c0_22], %27 {strides = array<i32>} : memref<8x128xf32, #tpu.memory_space<vmem>>, vector<8x128xf32>,
    } else {
    }
    return
  }
  func.func @transform_0(%arg0: i32, %arg1: i32, %arg2: i32) -> (i32, i32) {
    %c1_i32 = arith.constant 1 : i32
    %0 = arith.muli %arg1, %c1_i32 : i32
    %1 = arith.addi %0, %arg2 : i32
    %c0_i32 = arith.constant 0 : i32
    return %arg0, %1 : i32, i32
  }
  func.func @transform_1(%arg0: i32, %arg1: i32, %arg2: i32) -> (i32, i32) {
    %c1_i32 = arith.constant 1 : i32
    %0 = arith.muli %arg1, %c1_i32 : i32
    %1 = arith.addi %0, %arg2 : i32
    %c0_i32 = arith.constant 0 : i32
    return %arg0, %1 : i32, i32
  }
  func.func @transform_2(%arg0: i32, %arg1: i32, %arg2: i32) -> (i32, i32) {
    %c0_i32 = arith.constant 0 : i32
    return %arg0, %arg1 : i32, i32
  }
  func.func @transform_3(%arg0: i32, %arg1: i32, %arg2: i32) -> (i32, i32) {
    %c0_i32 = arith.constant 0 : i32
    return %arg0, %arg1 : i32, i32
  }
}

</mosaic_0001>

<llo_original>
// kernel: tpu_custom_call.1
$region0: #{tpu_custom_call.1}
  #allocation0 [shape = 'u32[]', space=smem, size = 0x4, offset = 0x4, fixed_abs, tag = 'smem constant byte address 0x4 - core index']
  #allocation1 [shape = 'u32[72,128]{1,0:T(1,128)}', space=vmem, size = 0x9000, scoped, tag = 'internal scratch']
  #allocation2 [shape = 'f32[8,1]{1,0:T(8,128)}', space=vmem, size = 0x1000, scoped, tag = 'scratch operand']
  #allocation3 [shape = 'f32[8,1]{1,0:T(8,128)}', space=vmem, size = 0x1000, scoped, tag = 'scratch operand']
  %s0 = inlined_call_operand.hbm [shape: f32[2,2048], index: 0, kind: input, shape index: {}]
  %s1 = inlined_call_operand.hbm [shape: f32[2,2048], index: 1, kind: input, shape index: {}]
  %s2 = inlined_call_operand.hbm [shape: f32[8,128], index: 2, kind: output, shape index: {0}]
  %s3 = inlined_call_operand.hbm [shape: f32[8,128], index: 3, kind: output, shape index: {1}]
  %4 = xla_tuple %s2, %s3
  %s5 = sld [smem:[#allocation0]]
  $region42: #{tpu_custom_call.1} parent=0
    _
  %s7 = ssub.s32 1, %s5
  %s8 = scalar_select 0, %s7, %s5
  $region1: #{tpu_custom_call.1} parent=0
    #allocation4 [shape = 'u8[65536]{0}', space=vmem, size = 0x10000, scoped, tag = 'input window, operand 0, single buffered']
    #allocation5 [shape = 's32[1]{0}', space=sflag, size = 0x4, scoped, tag = 'scoped memory for tpu_custom_call.1']
    #allocation6 [shape = 's32[1]{0}', space=sflag, size = 0x4, scoped, tag = 'scoped memory for tpu_custom_call.1']
    #allocation7 [shape = 'u8[65536]{0}', space=vmem, size = 0x10000, scoped, tag = 'input window, operand 1, single buffered']
    #allocation8 [shape = 's32[1]{0}', space=sflag, size = 0x4, scoped, tag = 'scoped memory for tpu_custom_call.1']
    #allocation9 [shape = 'u8[4096]{0}', space=vmem, size = 0x1000, scoped, tag = 'output window, operand 0, single buffered']
    #allocation10 [shape = 'u8[4096]{0}', space=vmem, size = 0x1000, scoped, tag = 'output window, operand 1, single buffered']
    #allocation11 [shape = 's32[1]{0}', space=sflag, size = 0x4, scoped, tag = 'scoped memory for tpu_custom_call.1']
    %9 = vsyncpa [#allocation5], 0
    %10 = vsyncpa [#allocation8], 0
    %11 = vsyncpa [#allocation6], 0
    %12 = vsyncpa [#allocation11], 0
    // Predicated region
    $region2: #{tpu_custom_call.1} parent=1 // pred_check
      _
    $region3: #{tpu_custom_call.1} parent=1 // pred_check_branch
      %14 = sbr.rel (0) target = $region5
    $region4: #{tpu_custom_call.1} parent=1 // pred_region
      %s15 = sadd.s32 0, 0
      %s16 = smul.u32 16, %s15
      %18 = vsyncadd [#allocation5], 1536
      %s19 = smul.addr %s16, 2
      %s20 = scalar_lea.hbm %s0, %s19
      %s21 = sshll.u32 %s20, 4
      %s22 = int_to_ptr.hbm [resolvable:$true] %s21
      %s23 = sshll.u32 [#allocation4], 4
      %s24 = int_to_ptr.vmem [resolvable:$true] %s23
      %29 = dma.hbm_to_vmem [thread:$0]  %s22, 512, %s24, [#allocation5], 512, 512, 32
    $region5: #{tpu_custom_call.1} parent=1 // pred_fallthru
      _
    // Predicated region
    $region6: #{tpu_custom_call.1} parent=1 // pred_check
      _
    $region7: #{tpu_custom_call.1} parent=1 // pred_check_branch
      %31 = sbr.rel (0) target = $region9
    $region8: #{tpu_custom_call.1} parent=1 // pred_region
      %s32 = sadd.s32 0, 0
      %s33 = smul.u32 16, %s32
      %35 = vsyncadd [#allocation8], 1536
      %s36 = smul.addr %s33, 2
      %s37 = scalar_lea.hbm %s1, %s36
      %s38 = sshll.u32 %s37, 4
      %s39 = int_to_ptr.hbm [resolvable:$true] %s38
      %s40 = sshll.u32 [#allocation7], 4
      %s41 = int_to_ptr.vmem [resolvable:$true] %s40
      %46 = dma.hbm_to_vmem [thread:$0]  %s39, 512, %s41, [#allocation8], 512, 512, 32
    $region9: #{tpu_custom_call.1} parent=1 // pred_fallthru
      _
    // Predicated region
    $region10: #{tpu_custom_call.1} parent=1 // pred_check
      _
    $region11: #{tpu_custom_call.1} parent=1 // pred_check_branch
      %48 = sbr.rel (0) target = $region13
    $region12: #{tpu_custom_call.1} parent=1 // pred_region
      %50 = dma.done [#allocation5], 2048
    $region13: #{tpu_custom_call.1} parent=1 // pred_fallthru
      _
    // Predicated region
    $region14: #{tpu_custom_call.1} parent=1 // pred_check
      _
    $region15: #{tpu_custom_call.1} parent=1 // pred_check_branch
      %52 = sbr.rel (0) target = $region17
    $region16: #{tpu_custom_call.1} parent=1 // pred_region
      %54 = dma.done [#allocation8], 2048
    $region17: #{tpu_custom_call.1} parent=1 // pred_fallthru
      _
    %s55 = sadd.s32 0, 0
    %s56 = smul.u32 16, %s55
    %s57 = sadd.s32 0, 0
    %s58 = smul.u32 16, %s57
    %p59 = scmp.eq.s32.totalorder 0, 0
    // Predicated region
    $region18: #{tpu_custom_call.1} parent=1 // pred_check
      %p60 = pneg %p59
    $region19: #{tpu_custom_call.1} parent=1 // pred_check_branch
      %62 = sbr.rel (%p60) target = $region21
    $region20: #{tpu_custom_call.1} parent=1 // pred_region
      %vm63 = vcmask 7168
      %64 = vst.msk [vmem:[#allocation2] sm:$0xff] %vm63, 0.0
      %65 = vst.msk [vmem:[#allocation3] sm:$0xff] %vm63, 0.0
    $region21: #{tpu_custom_call.1} parent=1 // pred_fallthru
      _
    %v66 = vld [vmem:[#allocation7] sm:$0xff]
    %v67 = vld [vmem:[#allocation7 + $0x8] sm:$0xff]
    %v68 = vld [vmem:[#allocation7 + $0x10] sm:$0xff]
    %v69 = vld [vmem:[#allocation7 + $0x18] sm:$0xff]
    %v70 = vld [vmem:[#allocation7 + $0x20] sm:$0xff]
    %v71 = vld [vmem:[#allocation7 + $0x28] sm:$0xff]
    %v72 = vld [vmem:[#allocation7 + $0x30] sm:$0xff]
    %v73 = vld [vmem:[#allocation7 + $0x38] sm:$0xff]
    %v74 = vld [vmem:[#allocation7 + $0x40] sm:$0xff]
    %v75 = vld [vmem:[#allocation7 + $0x48] sm:$0xff]
    %v76 = vld [vmem:[#allocation7 + $0x50] sm:$0xff]
    %v77 = vld [vmem:[#allocation7 + $0x58] sm:$0xff]
    %v78 = vld [vmem:[#allocation7 + $0x60] sm:$0xff]
    %v79 = vld [vmem:[#allocation7 + $0x68] sm:$0xff]
    %v80 = vld [vmem:[#allocation7 + $0x70] sm:$0xff]
    %v81 = vld [vmem:[#allocation7 + $0x78] sm:$0xff]
    %v82 = vld [vmem:[#allocation4] sm:$0xff]
    %v83 = vld [vmem:[#allocation4 + $0x8] sm:$0xff]
    %v84 = vld [vmem:[#allocation4 + $0x10] sm:$0xff]
    %v85 = vld [vmem:[#allocation4 + $0x18] sm:$0xff]
    %v86 = vld [vmem:[#allocation4 + $0x20] sm:$0xff]
    %v87 = vld [vmem:[#allocation4 + $0x28] sm:$0xff]
    %v88 = vld [vmem:[#allocation4 + $0x30] sm:$0xff]
    %v89 = vld [vmem:[#allocation4 + $0x38] sm:$0xff]
    %v90 = vld [vmem:[#allocation4 + $0x40] sm:$0xff]
    %v91 = vld [vmem:[#allocation4 + $0x48] sm:$0xff]
    %v92 = vld [vmem:[#allocation4 + $0x50] sm:$0xff]
    %v93 = vld [vmem:[#allocation4 + $0x58] sm:$0xff]
    %v94 = vld [vmem:[#allocation4 + $0x60] sm:$0xff]
    %v95 = vld [vmem:[#allocation4 + $0x68] sm:$0xff]
    %v96 = vld [vmem:[#allocation4 + $0x70] sm:$0xff]
    %v97 = vld [vmem:[#allocation4 + $0x78] sm:$0xff]
    %v98 = vsub.f32 %v82, %v66
    %v99 = vsub.f32 %v83, %v67
    %v100 = vsub.f32 %v84, %v68
    %v101 = vsub.f32 %v85, %v69
    %v102 = vsub.f32 %v86, %v70
    %v103 = vsub.f32 %v87, %v71
    %v104 = vsub.f32 %v88, %v72
    %v105 = vsub.f32 %v89, %v73
    %v106 = vsub.f32 %v90, %v74
    %v107 = vsub.f32 %v91, %v75
    %v108 = vsub.f32 %v92, %v76
    %v109 = vsub.f32 %v93, %v77
    %v110 = vsub.f32 %v94, %v78
    %v111 = vsub.f32 %v95, %v79
    %v112 = vsub.f32 %v96, %v80
    %v113 = vsub.f32 %v97, %v81
    %v114 = vld [vmem:[#allocation2] sm:$0xff]
    %v115 = vmul.f32 %v66, %v66
    %v116 = vmul.f32 %v67, %v67
    %v117 = vmul.f32 %v68, %v68
    %v118 = vmul.f32 %v69, %v69
    %v119 = vmul.f32 %v70, %v70
    %v120 = vmul.f32 %v71, %v71
    %v121 = vmul.f32 %v72, %v72
    %v122 = vmul.f32 %v73, %v73
    %v123 = vmul.f32 %v74, %v74
    %v124 = vmul.f32 %v75, %v75
    %v125 = vmul.f32 %v76, %v76
    %v126 = vmul.f32 %v77, %v77
    %v127 = vmul.f32 %v78, %v78
    %v128 = vmul.f32 %v79, %v79
    %v129 = vmul.f32 %v80, %v80
    %v130 = vmul.f32 %v81, %v81
    %147 = vst [vmem:[#allocation1] ss:$4 sm:$0xff] %v115
    %s148 = scalar_lea.vmem [#allocation1], 1
    %149 = vst [vmem:[%s148] ss:$4 sm:$0xff] %v119
    %s150 = scalar_lea.vmem [#allocation1], 2
    %151 = vst [vmem:[%s150] ss:$4 sm:$0xff] %v123
    %s152 = scalar_lea.vmem [#allocation1], 3
    %153 = vst [vmem:[%s152] ss:$4 sm:$0xff] %v127
    %s154 = scalar_lea.vmem [#allocation1], 32
    %155 = vst [vmem:[%s154] ss:$4 sm:$0xff] %v116
    %s156 = scalar_lea.vmem [#allocation1], 33
    %157 = vst [vmem:[%s156] ss:$4 sm:$0xff] %v120
    %s158 = scalar_lea.vmem [#allocation1], 34
    %159 = vst [vmem:[%s158] ss:$4 sm:$0xff] %v124
    %s160 = scalar_lea.vmem [#allocation1], 35
    %161 = vst [vmem:[%s160] ss:$4 sm:$0xff] %v128
    %v162 = vld.sshfl [vmem:[#allocation1] sm:$0xff pattern:$0x73625140]
    %v163 = vld.sshfl [vmem:[#allocation1 + $0x8] sm:$0xff pattern:$0x73625140]
    %v164 = vld.sshfl [vmem:[#allocation1 + $0x10] sm:$0xff pattern:$0x73625140]
    %v165 = vld.sshfl [vmem:[#allocation1 + $0x18] sm:$0xff pattern:$0x73625140]
    %v166 = vld.sshfl [vmem:[#allocation1 + $0x20] sm:$0xff pattern:$0x73625140]
    %v167 = vld.sshfl [vmem:[#allocation1 + $0x28] sm:$0xff pattern:$0x73625140]
    %v168 = vld.sshfl [vmem:[#allocation1 + $0x30] sm:$0xff pattern:$0x73625140]
    %v169 = vld.sshfl [vmem:[#allocation1 + $0x38] sm:$0xff pattern:$0x73625140]
    %170 = vst [vmem:[#allocation1] ss:$4 sm:$0xff] %v117
    %171 = vst [vmem:[%s148] ss:$4 sm:$0xff] %v121
    %172 = vst [vmem:[%s150] ss:$4 sm:$0xff] %v125
    %173 = vst [vmem:[%s152] ss:$4 sm:$0xff] %v129
    %174 = vst [vmem:[%s154] ss:$4 sm:$0xff] %v118
    %175 = vst [vmem:[%s156] ss:$4 sm:$0xff] %v122
    %176 = vst [vmem:[%s158] ss:$4 sm:$0xff] %v126
    %177 = vst [vmem:[%s160] ss:$4 sm:$0xff] %v130
    %v178 = vld.sshfl [vmem:[#allocation1] sm:$0xff pattern:$0x73625140]
    %v179 = vld.sshfl [vmem:[#allocation1 + $0x8] sm:$0xff pattern:$0x73625140]
    %v180 = vld.sshfl [vmem:[#allocation1 + $0x10] sm:$0xff pattern:$0x73625140]
    %v181 = vld.sshfl [vmem:[#allocation1 + $0x18] sm:$0xff pattern:$0x73625140]
    %v182 = vld.sshfl [vmem:[#allocation1 + $0x20] sm:$0xff pattern:$0x73625140]
    %v183 = vld.sshfl [vmem:[#allocation1 + $0x28] sm:$0xff pattern:$0x73625140]
    %v184 = vld.sshfl [vmem:[#allocation1 + $0x30] sm:$0xff pattern:$0x73625140]
    %v185 = vld.sshfl [vmem:[#allocation1 + $0x38] sm:$0xff pattern:$0x73625140]
    %v202 = vadd.f32 %v162, %v163
    %v203 = vadd.f32 %v202, %v164
    %v204 = vadd.f32 %v203, %v165
    %v205 = vadd.f32 %v204, %v166
    %v206 = vadd.f32 %v205, %v167
    %v207 = vadd.f32 %v206, %v168
    %v208 = vadd.f32 %v207, %v169
    %v209 = vadd.f32 %v208, %v178
    %v210 = vadd.f32 %v209, %v179
    %v211 = vadd.f32 %v210, %v180
    %v212 = vadd.f32 %v211, %v181
    %v213 = vadd.f32 %v212, %v182
    %v214 = vadd.f32 %v213, %v183
    %v215 = vadd.f32 %v214, %v184
    %v216 = vadd.f32 %v215, %v185
    %217 = vadd.xlane.f32.xlu0 %v216
    %v218 = vpop.xlane.xlu0 %217
    %v219 = vadd.f32 %v114, %v218
    %vm220 = vcmask 7168
    %221 = vst.msk [vmem:[#allocation2] sm:$0xff] %vm220, %v219
    %v222 = vld [vmem:[#allocation3] sm:$0xff]
    %v223 = vmul.f32 %v98, %v98
    %v224 = vmul.f32 %v99, %v99
    %v225 = vmul.f32 %v100, %v100
    %v226 = vmul.f32 %v101, %v101
    %v227 = vmul.f32 %v102, %v102
    %v228 = vmul.f32 %v103, %v103
    %v229 = vmul.f32 %v104, %v104
    %v230 = vmul.f32 %v105, %v105
    %v231 = vmul.f32 %v106, %v106
    %v232 = vmul.f32 %v107, %v107
    %v233 = vmul.f32 %v108, %v108
    %v234 = vmul.f32 %v109, %v109
    %v235 = vmul.f32 %v110, %v110
    %v236 = vmul.f32 %v111, %v111
    %v237 = vmul.f32 %v112, %v112
    %v238 = vmul.f32 %v113, %v113
    %255 = vst [vmem:[#allocation1] ss:$4 sm:$0xff] %v223
    %s256 = scalar_lea.vmem [#allocation1], 1
    %257 = vst [vmem:[%s256] ss:$4 sm:$0xff] %v227
    %s258 = scalar_lea.vmem [#allocation1], 2
    %259 = vst [vmem:[%s258] ss:$4 sm:$0xff] %v231
    %s260 = scalar_lea.vmem [#allocation1], 3
    %261 = vst [vmem:[%s260] ss:$4 sm:$0xff] %v235
    %s262 = scalar_lea.vmem [#allocation1], 32
    %263 = vst [vmem:[%s262] ss:$4 sm:$0xff] %v224
    %s264 = scalar_lea.vmem [#allocation1], 33
    %265 = vst [vmem:[%s264] ss:$4 sm:$0xff] %v228
    %s266 = scalar_lea.vmem [#allocation1], 34
    %267 = vst [vmem:[%s266] ss:$4 sm:$0xff] %v232
    %s268 = scalar_lea.vmem [#allocation1], 35
    %269 = vst [vmem:[%s268] ss:$4 sm:$0xff] %v236
    %v270 = vld.sshfl [vmem:[#allocation1] sm:$0xff pattern:$0x73625140]
    %v271 = vld.sshfl [vmem:[#allocation1 + $0x8] sm:$0xff pattern:$0x73625140]
    %v272 = vld.sshfl [vmem:[#allocation1 + $0x10] sm:$0xff pattern:$0x73625140]
    %v273 = vld.sshfl [vmem:[#allocation1 + $0x18] sm:$0xff pattern:$0x73625140]
    %v274 = vld.sshfl [vmem:[#allocation1 + $0x20] sm:$0xff pattern:$0x73625140]
    %v275 = vld.sshfl [vmem:[#allocation1 + $0x28] sm:$0xff pattern:$0x73625140]
    %v276 = vld.sshfl [vmem:[#allocation1 + $0x30] sm:$0xff pattern:$0x73625140]
    %v277 = vld.sshfl [vmem:[#allocation1 + $0x38] sm:$0xff pattern:$0x73625140]
    %278 = vst [vmem:[#allocation1] ss:$4 sm:$0xff] %v225
    %279 = vst [vmem:[%s256] ss:$4 sm:$0xff] %v229
    %280 = vst [vmem:[%s258] ss:$4 sm:$0xff] %v233
    %281 = vst [vmem:[%s260] ss:$4 sm:$0xff] %v237
    %282 = vst [vmem:[%s262] ss:$4 sm:$0xff] %v226
    %283 = vst [vmem:[%s264] ss:$4 sm:$0xff] %v230
    %284 = vst [vmem:[%s266] ss:$4 sm:$0xff] %v234
    %285 = vst [vmem:[%s268] ss:$4 sm:$0xff] %v238
    %v286 = vld.sshfl [vmem:[#allocation1] sm:$0xff pattern:$0x73625140]
    %v287 = vld.sshfl [vmem:[#allocation1 + $0x8] sm:$0xff pattern:$0x73625140]
    %v288 = vld.sshfl [vmem:[#allocation1 + $0x10] sm:$0xff pattern:$0x73625140]
    %v289 = vld.sshfl [vmem:[#allocation1 + $0x18] sm:$0xff pattern:$0x73625140]
    %v290 = vld.sshfl [vmem:[#allocation1 + $0x20] sm:$0xff pattern:$0x73625140]
    %v291 = vld.sshfl [vmem:[#allocation1 + $0x28] sm:$0xff pattern:$0x73625140]
    %v292 = vld.sshfl [vmem:[#allocation1 + $0x30] sm:$0xff pattern:$0x73625140]
    %v293 = vld.sshfl [vmem:[#allocation1 + $0x38] sm:$0xff pattern:$0x73625140]
    %v310 = vadd.f32 %v270, %v271
    %v311 = vadd.f32 %v310, %v272
    %v312 = vadd.f32 %v311, %v273
    %v313 = vadd.f32 %v312, %v274
    %v314 = vadd.f32 %v313, %v275
    %v315 = vadd.f32 %v314, %v276
    %v316 = vadd.f32 %v315, %v277
    %v317 = vadd.f32 %v316, %v286
    %v318 = vadd.f32 %v317, %v287
    %v319 = vadd.f32 %v318, %v288
    %v320 = vadd.f32 %v319, %v289
    %v321 = vadd.f32 %v320, %v290
    %v322 = vadd.f32 %v321, %v291
    %v323 = vadd.f32 %v322, %v292
    %v324 = vadd.f32 %v323, %v293
    %325 = vadd.xlane.f32.xlu0 %v324
    %v326 = vpop.xlane.xlu0 %325
    %v327 = vadd.f32 %v222, %v326
    %328 = vst.msk [vmem:[#allocation3] sm:$0xff] %vm220, %v327
    // Predicated region
    $region22: #{tpu_custom_call.1} parent=1 // pred_check
      %p329 = pneg %p59
    $region23: #{tpu_custom_call.1} parent=1 // pred_check_branch
      %331 = sbr.rel (%p329) target = $region25
    $region24: #{tpu_custom_call.1} parent=1 // pred_region
      %v332 = vld [vmem:[#allocation2] sm:$0xff]
      %334 = vset.pattern.permute.xlu0 0
      %335 = vperm.xlu0 %334, %v332
      %v336 = vpop.permute.xlu0 %335
      %338 = vst [vmem:[#allocation9] sm:$0xff] %v336
      %v339 = vld [vmem:[#allocation3] sm:$0xff]
      %341 = vset.pattern.permute.xlu0 0
      %342 = vperm.xlu0 %341, %v339
      %v343 = vpop.permute.xlu0 %342
      %345 = vst [vmem:[#allocation10] sm:$0xff] %v343
    $region25: #{tpu_custom_call.1} parent=1 // pred_fallthru
      _
    // Predicated region
    $region26: #{tpu_custom_call.1} parent=1 // pred_check
      _
    $region27: #{tpu_custom_call.1} parent=1 // pred_check_branch
      %347 = sbr.rel (0) target = $region29
    $region28: #{tpu_custom_call.1} parent=1 // pred_region
      %349 = vsyncadd [#allocation6], 0
      %s351 = sshll.u32 [#allocation9], 4
      %s352 = int_to_ptr.vmem [resolvable:$true] %s351
      %s353 = sshll.u32 %s2, 4
      %s354 = int_to_ptr.hbm [resolvable:$true] %s353
      %356 = dma.vmem_to_hbm [thread:$0]  %s352, 128, %s354, [#allocation6]
    $region29: #{tpu_custom_call.1} parent=1 // pred_fallthru
      _
    // Predicated region
    $region30: #{tpu_custom_call.1} parent=1 // pred_check
      _
    $region31: #{tpu_custom_call.1} parent=1 // pred_check_branch
      %358 = sbr.rel (0) target = $region33
    $region32: #{tpu_custom_call.1} parent=1 // pred_region
      %360 = vsyncadd [#allocation11], 0
      %s362 = sshll.u32 [#allocation10], 4
      %s363 = int_to_ptr.vmem [resolvable:$true] %s362
      %s364 = sshll.u32 %s3, 4
      %s365 = int_to_ptr.hbm [resolvable:$true] %s364
      %367 = dma.vmem_to_hbm [thread:$0]  %s363, 128, %s365, [#allocation11]
    $region33: #{tpu_custom_call.1} parent=1 // pred_fallthru
      _
    // Predicated region
    $region34: #{tpu_custom_call.1} parent=1 // pred_check
      _
    $region35: #{tpu_custom_call.1} parent=1 // pred_check_branch
      %369 = sbr.rel (0) target = $region37
    $region36: #{tpu_custom_call.1} parent=1 // pred_region
      %371 = dma.done [#allocation6], 128
    $region37: #{tpu_custom_call.1} parent=1 // pred_fallthru
      _
    // Predicated region
    $region38: #{tpu_custom_call.1} parent=1 // pred_check
      _
    $region39: #{tpu_custom_call.1} parent=1 // pred_check_branch
      %373 = sbr.rel (0) target = $region41
    $region40: #{tpu_custom_call.1} parent=1 // pred_region
      %375 = dma.done [#allocation11], 128
    $region41: #{tpu_custom_call.1} parent=1 // pred_fallthru
      _
    %376 = vsyncpa [#allocation5], 1
    %377 = vsyncpa [#allocation8], 1
    %378 = vsyncpa [#allocation6], 1
    %379 = vsyncpa [#allocation11], 1

</llo_original>
